<compile_context>
chip_gen: v5e
topology: v5e:2x2
jax: 0.10.0
libtpu: 0.0.40
codegen_flags: <defaults>
</compile_context>

<pallas_src>
import jax
import jax.numpy as jnp
from jax.experimental import pallas as pl
from jax.experimental.pallas import tpu as pltpu

EPS = 1e-07


def _round_up(x, m):
    return ((x + m - 1) // m) * m


def _dice_kernel(probs_ref, mask_ref, dice_ref, num_acc, den1_acc, den2_acc):
    # probs_ref: (1, C, TS) f32  -> output[n, :, spatial tile]
    # mask_ref : (1, 1, TS) i32  -> mask[n, spatial tile] (padded with -1)
    # dice_ref : (1, C, 1)  f32  -> per-(n, c) dice (written at last tile)
    # *_acc    : (C, 1)     f32  -> per-class partial sums across spatial tiles
    t = pl.program_id(1)

    @pl.when(t == 0)
    def _():
        num_acc[...] = jnp.zeros_like(num_acc)
        den1_acc[...] = jnp.zeros_like(den1_acc)
        den2_acc[...] = jnp.zeros_like(den2_acc)

    probs = probs_ref[0]                                  # (C, TS) f32
    labels = mask_ref[0]                                  # (1, TS) i32
    c_dim = probs.shape[0]

    class_ids = jax.lax.broadcasted_iota(jnp.int32, (c_dim, 1), 0)  # (C, 1)
    one_hot = labels == class_ids                          # (C, TS) bool

    num_acc[...] = num_acc[...] + jnp.sum(
        jnp.where(one_hot, probs, 0.0), axis=-1, keepdims=True)
    den1_acc[...] = den1_acc[...] + jnp.sum(
        probs * probs, axis=-1, keepdims=True)
    den2_acc[...] = den2_acc[...] + jnp.sum(
        one_hot.astype(jnp.float32), axis=-1, keepdims=True)

    @pl.when(t == pl.num_programs(1) - 1)
    def _():
        dice = 2.0 * ((num_acc[...] + EPS)
                      / (den1_acc[...] + den2_acc[...] + EPS))   # (C, 1)
        dice_ref[0] = dice


def dice_loss_multiclass(output, mask):
    """output: (N, C, H, W) float probabilities, mask: (N, H, W) int labels."""
    N, C, H, W = output.shape
    assert mask.shape == (N, H, W)
    HW = H * W

    probs = output.astype(jnp.float32).reshape(N, C, HW)
    labels = mask.astype(jnp.int32).reshape(N, 1, HW)

    # Lane-dense spatial tile, sized so double-buffered inputs stay small
    # (safe even on v7x's 64 MiB VMEM).
    LANE_UNIT = 512
    VMEM_BUDGET = 12 * 1024 * 1024                       # 2 * (C+1) * TS * 4 <= budget
    ts_cap = VMEM_BUDGET // (2 * 4 * (C + 1))
    ts_cap = max(LANE_UNIT, (ts_cap // LANE_UNIT) * LANE_UNIT)
    TS = min(_round_up(HW, LANE_UNIT), ts_cap)
    HW_pad = _round_up(HW, TS)
    T = HW_pad // TS

    if HW_pad != HW:
        pad = HW_pad - HW
        probs = jnp.pad(probs, ((0, 0), (0, 0), (0, pad)))                    # zeros
        labels = jnp.pad(labels, ((0, 0), (0, 0), (0, pad)), constant_values=-1)

    dice = pl.pallas_call(
        _dice_kernel,
        out_shape=jax.ShapeDtypeStruct((N, C, 1), jnp.float32),
        grid_spec=pltpu.PrefetchScalarGridSpec(
            num_scalar_prefetch=0,
            grid=(N, T),
            in_specs=[
                pl.BlockSpec((1, C, TS), lambda n, t: (n, 0, t)),
                pl.BlockSpec((1, 1, TS), lambda n, t: (n, 0, t)),
            ],
            out_specs=pl.BlockSpec((1, C, 1), lambda n, t: (n, 0, 0)),
            scratch_shapes=[
                pltpu.VMEM((C, 1), jnp.float32),   # num partial
                pltpu.VMEM((C, 1), jnp.float32),   # den1 partial
                pltpu.VMEM((C, 1), jnp.float32),   # den2 partial
            ],
        ),
        compiler_params=pltpu.CompilerParams(
            dimension_semantics=("parallel", "arbitrary"),
            vmem_limit_bytes=32 * 1024 * 1024,
        ),
        cost_estimate=pl.CostEstimate(
            flops=6 * N * C * HW_pad,
            transcendentals=0,
            bytes_accessed=4 * N * (C + 1) * HW_pad + 4 * N * C,
        ),
    )(probs, labels)

    total = jnp.sum(dice)
    return 1.0 - total / jnp.float32(N) / jnp.float32(N)


def _reference(output, mask):
    N, C, H, W = output.shape
    one_hot = (mask[:, None, :, :] == jnp.arange(C)[None, :, None, None]).astype(
        jnp.float32
    )  # (N, C, H, W)
    num = jnp.sum(output * one_hot, axis=(2, 3))      # (N, C)
    den1 = jnp.sum(output * output, axis=(2, 3))      # (N, C)
    den2 = jnp.sum(one_hot * one_hot, axis=(2, 3))    # (N, C)
    dice = 2.0 * ((num + EPS) / (den1 + den2 + EPS))  # (N, C)
    return 1.0 - jnp.sum(dice) / N / N


if __name__ == "__main__":
    key = jax.random.PRNGKey(0)
    k1, k2 = jax.random.split(key)

    N, C, H, W = 2, 4, 16, 16
    logits = jax.random.normal(k1, (N, C, H, W), dtype=jnp.float32)
    output = jax.nn.softmax(logits, axis=1)                     # probabilities, NCHW
    mask = jax.random.randint(k2, (N, H, W), 0, C, dtype=jnp.int32)

    loss = dice_loss_multiclass(output, mask)
    loss = jax.block_until_ready(loss)

    ref = jax.block_until_ready(_reference(output, mask))
    assert jnp.allclose(loss, ref, atol=1e-5, rtol=1e-5), (loss, ref)

    print("KERNEL_OK")
</pallas_src>

<mosaic_0001>
module attributes {stable_mosaic.version = 11 : i64} {
  func.func @_dice_kernel(%arg0: i32, %arg1: i32, %arg2: memref<1x4x512xf32, #tpu.memory_space<vmem>>, %arg3: memref<1x1x512xi32, #tpu.memory_space<vmem>>, %arg4: memref<1x4x1xf32, #tpu.memory_space<vmem>>, %arg5: memref<4x1xf32, #tpu.memory_space<vmem>>, %arg6: memref<4x1xf32, #tpu.memory_space<vmem>>, %arg7: memref<4x1xf32, #tpu.memory_space<vmem>>) attributes {dimension_semantics = [#tpu.dimension_semantics<parallel>, #tpu.dimension_semantics<arbitrary>], iteration_bounds = array<i64: 2, 1>, scalar_prefetch = 0 : i64, scratch_operands = 3 : i64, tpu.core_type = #tpu.core_type<tc>, window_params = [{transform_indices = @transform_0, window_bounds = array<i64: 1, 4, 512>}, {transform_indices = @transform_1, window_bounds = array<i64: 1, 1, 512>}, {transform_indices = @transform_2, window_bounds = array<i64: 1, 4, 1>}]} {
    %c0_i32 = arith.constant 0 : i32
    %0 = arith.cmpi eq, %arg1, %c0_i32 : i32
    %1 = arith.extui %0 : i1 to i32
    %c0_i32_0 = arith.constant 0 : i32
    %2 = arith.cmpi ne, %1, %c0_i32_0 : i32
    scf.if %2 {
      %cst_23 = arith.constant 0.000000e+00 : f32
      %34 = vector.broadcast %cst_23 : f32 to vector<4x1xf32>
      %c0_24 = arith.constant 0 : index
      %c0_25 = arith.constant 0 : index
      %35 = vector.load %arg5[%c0_24, %c0_25] : memref<4x1xf32, #tpu.memory_space<vmem>>, vector<4x1xf32>
      tpu.vector_store %arg5[%c0_24, %c0_25], %34 {strides = array<i32>} : memref<4x1xf32, #tpu.memory_space<vmem>>, vector<4x1xf32>,
      %cst_26 = arith.constant 0.000000e+00 : f32
      %36 = vector.broadcast %cst_26 : f32 to vector<4x1xf32>
      %c0_27 = arith.constant 0 : index
      %c0_28 = arith.constant 0 : index
      %37 = vector.load %arg6[%c0_27, %c0_28] : memref<4x1xf32, #tpu.memory_space<vmem>>, vector<4x1xf32>
      tpu.vector_store %arg6[%c0_27, %c0_28], %36 {strides = array<i32>} : memref<4x1xf32, #tpu.memory_space<vmem>>, vector<4x1xf32>,
      %cst_29 = arith.constant 0.000000e+00 : f32
      %38 = vector.broadcast %cst_29 : f32 to vector<4x1xf32>
      %c0_30 = arith.constant 0 : index
      %c0_31 = arith.constant 0 : index
      %39 = vector.load %arg7[%c0_30, %c0_31] : memref<4x1xf32, #tpu.memory_space<vmem>>, vector<4x1xf32>
      tpu.vector_store %arg7[%c0_30, %c0_31], %38 {strides = array<i32>} : memref<4x1xf32, #tpu.memory_space<vmem>>, vector<4x1xf32>,
    } else {
    }
    %c0 = arith.constant 0 : index
    %c0_1 = arith.constant 0 : index
    %c0_2 = arith.constant 0 : index
    %3 = vector.load %arg2[%c0, %c0_1, %c0_2] : memref<1x4x512xf32, #tpu.memory_space<vmem>>, vector<1x4x512xf32>
    %4 = vector.shape_cast %3 : vector<1x4x512xf32> to vector<4x512xf32>
    %c0_3 = arith.constant 0 : index
    %c0_4 = arith.constant 0 : index
    %c0_5 = arith.constant 0 : index
    %5 = vector.load %arg3[%c0_3, %c0_4, %c0_5] : memref<1x1x512xi32, #tpu.memory_space<vmem>>, vector<1x1x512xi32>
    %6 = vector.shape_cast %5 : vector<1x1x512xi32> to vector<1x512xi32>
    %7 = tpu.iota {dimensions = array<i32: 0>} : vector<4x1xi32>
    %8 = vector.broadcast %6 : vector<1x512xi32> to vector<4x512xi32>
    %9 = vector.broadcast %7 : vector<4x1xi32> to vector<4x512xi32>
    %10 = arith.cmpi eq, %8, %9 : vector<4x512xi32>
    %c0_6 = arith.constant 0 : index
    %c0_7 = arith.constant 0 : index
    %11 = vector.load %arg5[%c0_6, %c0_7] : memref<4x1xf32, #tpu.memory_space<vmem>>, vector<4x1xf32>
    %cst = arith.constant 0.000000e+00 : f32
    %12 = vector.broadcast %cst : f32 to vector<4x512xf32>
    %13 = arith.select %10, %4, %12 : vector<4x512xi1>, vector<4x512xf32>
    %cst_8 = arith.constant dense<0.000000e+00> : vector<4xf32>
    %14 = vector.multi_reduction <add>, %13, %cst_8 [1] : vector<4x512xf32> to vector<4xf32>
    %15 = vector.shape_cast %14 : vector<4xf32> to vector<4x1xf32>
    %16 = arith.addf %11, %15 : vector<4x1xf32>
    %c0_9 = arith.constant 0 : index
    %c0_10 = arith.constant 0 : index
    %17 = vector.load %arg5[%c0_9, %c0_10] : memref<4x1xf32, #tpu.memory_space<vmem>>, vector<4x1xf32>
    tpu.vector_store %arg5[%c0_9, %c0_10], %16 {strides = array<i32>} : memref<4x1xf32, #tpu.memory_space<vmem>>, vector<4x1xf32>,
    %c0_11 = arith.constant 0 : index
    %c0_12 = arith.constant 0 : index
    %18 = vector.load %arg6[%c0_11, %c0_12] : memref<4x1xf32, #tpu.memory_space<vmem>>, vector<4x1xf32>
    %19 = arith.mulf %4, %4 : vector<4x512xf32>
    %cst_13 = arith.constant dense<0.000000e+00> : vector<4xf32>
    %20 = vector.multi_reduction <add>, %19, %cst_13 [1] : vector<4x512xf32> to vector<4xf32>
    %21 = vector.shape_cast %20 : vector<4xf32> to vector<4x1xf32>
    %22 = arith.addf %18, %21 : vector<4x1xf32>
    %c0_14 = arith.constant 0 : index
    %c0_15 = arith.constant 0 : index
    %23 = vector.load %arg6[%c0_14, %c0_15] : memref<4x1xf32, #tpu.memory_space<vmem>>, vector<4x1xf32>
    tpu.vector_store %arg6[%c0_14, %c0_15], %22 {strides = array<i32>} : memref<4x1xf32, #tpu.memory_space<vmem>>, vector<4x1xf32>,
    %c0_16 = arith.constant 0 : index
    %c0_17 = arith.constant 0 : index
    %24 = vector.load %arg7[%c0_16, %c0_17] : memref<4x1xf32, #tpu.memory_space<vmem>>, vector<4x1xf32>
    %25 = arith.extui %10 : vector<4x512xi1> to vector<4x512xi32>
    %26 = arith.sitofp %25 : vector<4x512xi32> to vector<4x512xf32>
    %cst_18 = arith.constant dense<0.000000e+00> : vector<4xf32>
    %27 = vector.multi_reduction <add>, %26, %cst_18 [1] : vector<4x512xf32> to vector<4xf32>
    %28 = vector.shape_cast %27 : vector<4xf32> to vector<4x1xf32>
    %29 = arith.addf %24, %28 : vector<4x1xf32>
    %c0_19 = arith.constant 0 : index
    %c0_20 = arith.constant 0 : index
    %30 = vector.load %arg7[%c0_19, %c0_20] : memref<4x1xf32, #tpu.memory_space<vmem>>, vector<4x1xf32>
    tpu.vector_store %arg7[%c0_19, %c0_20], %29 {strides = array<i32>} : memref<4x1xf32, #tpu.memory_space<vmem>>, vector<4x1xf32>,
    %c0_i32_21 = arith.constant 0 : i32
    %31 = arith.cmpi eq, %arg1, %c0_i32_21 : i32
    %32 = arith.extui %31 : i1 to i32
    %c0_i32_22 = arith.constant 0 : i32
    %33 = arith.cmpi ne, %32, %c0_i32_22 : i32
    scf.if %33 {
      %c0_23 = arith.constant 0 : index
      %c0_24 = arith.constant 0 : index
      %34 = vector.load %arg5[%c0_23, %c0_24] : memref<4x1xf32, #tpu.memory_space<vmem>>, vector<4x1xf32>
      %cst_25 = arith.constant 1.000000e-07 : f32
      %35 = vector.broadcast %cst_25 : f32 to vector<4x1xf32>
      %36 = arith.addf %34, %35 : vector<4x1xf32>
      %c0_26 = arith.constant 0 : index
      %c0_27 = arith.constant 0 : index
      %37 = vector.load %arg6[%c0_26, %c0_27] : memref<4x1xf32, #tpu.memory_space<vmem>>, vector<4x1xf32>
      %c0_28 = arith.constant 0 : index
      %c0_29 = arith.constant 0 : index
      %38 = vector.load %arg7[%c0_28, %c0_29] : memref<4x1xf32, #tpu.memory_space<vmem>>, vector<4x1xf32>
      %39 = arith.addf %37, %38 : vector<4x1xf32>
      %cst_30 = arith.constant 1.000000e-07 : f32
      %40 = vector.broadcast %cst_30 : f32 to vector<4x1xf32>
      %41 = arith.addf %39, %40 : vector<4x1xf32>
      %42 = arith.divf %36, %41 : vector<4x1xf32>
      %cst_31 = arith.constant 2.000000e+00 : f32
      %43 = vector.broadcast %cst_31 : f32 to vector<4x1xf32>
      %44 = arith.mulf %43, %42 : vector<4x1xf32>
      %c0_32 = arith.constant 0 : index
      %c0_33 = arith.constant 0 : index
      %c0_34 = arith.constant 0 : index
      %45 = vector.load %arg4[%c0_32, %c0_33, %c0_34] : memref<1x4x1xf32, #tpu.memory_space<vmem>>, vector<1x4x1xf32>
      %46 = vector.shape_cast %45 : vector<1x4x1xf32> to vector<4x1xf32>
      %47 = vector.shape_cast %44 : vector<4x1xf32> to vector<1x4x1xf32>
      tpu.vector_store %arg4[%c0_32, %c0_33, %c0_34], %47 {strides = array<i32>} : memref<1x4x1xf32, #tpu.memory_space<vmem>>, vector<1x4x1xf32>,
    } else {
    }
    return
  }
  func.func @transform_0(%arg0: i32, %arg1: i32) -> (i32, i32, i32) {
    %c0_i32 = arith.constant 0 : i32
    %c0_i32_0 = arith.constant 0 : i32
    return %arg0, %c0_i32, %arg1 : i32, i32, i32
  }
  func.func @transform_1(%arg0: i32, %arg1: i32) -> (i32, i32, i32) {
    %c0_i32 = arith.constant 0 : i32
    %c0_i32_0 = arith.constant 0 : i32
    return %arg0, %c0_i32, %arg1 : i32, i32, i32
  }
  func.func @transform_2(%arg0: i32, %arg1: i32) -> (i32, i32, i32) {
    %c0_i32 = arith.constant 0 : i32
    %c0_i32_0 = arith.constant 0 : i32
    %c0_i32_1 = arith.constant 0 : i32
    return %arg0, %c0_i32, %c0_i32_0 : i32, i32, i32
  }
}

</mosaic_0001>

<llo_original>
// kernel: tpu_custom_call.1
$region0: #{tpu_custom_call.1}
  #allocation0 [shape = 'u32[]', space=smem, size = 0x4, offset = 0x4, fixed_abs, tag = 'smem constant byte address 0x4 - core index']
  #allocation1 [shape = 'u32[72,128]{1,0:T(1,128)}', space=vmem, size = 0x9000, scoped, tag = 'internal scratch']
  #allocation2 [shape = 'f32[4,1]{1,0:T(4,128)}', space=vmem, size = 0x800, scoped, tag = 'scratch operand']
  #allocation3 [shape = 'f32[4,1]{1,0:T(4,128)}', space=vmem, size = 0x800, scoped, tag = 'scratch operand']
  #allocation4 [shape = 'f32[4,1]{1,0:T(4,128)}', space=vmem, size = 0x800, scoped, tag = 'scratch operand']
  %s0 = inlined_call_operand.hbm [shape: f32[2,4,512], index: 0, kind: input, shape index: {}]
  %s1 = inlined_call_operand.hbm [shape: s32[2,1,512], index: 1, kind: input, shape index: {}]
  %s2 = inlined_call_operand.vmem [shape: f32[2,4,1], index: 2, kind: output, shape index: {}]
  %s3 = sld [smem:[#allocation0]]
  $region57: #{tpu_custom_call.1} parent=0
    _
  %s5 = ssub.s32 1, %s3
  %s6 = scalar_select 0, %s5, %s3
  $region1: #{tpu_custom_call.1} parent=0
    #allocation5 [shape = 'u8[16384]{0}', space=vmem, size = 0x4000, scoped, tag = 'input window, operand 0']
    #allocation6 [shape = 's32[2]{0}', space=sflag, size = 0x8, scoped, tag = 'scoped memory for tpu_custom_call.1']
    #allocation7 [shape = 'u8[4096]{0}', space=vmem, size = 0x1000, scoped, tag = 'input window, operand 1']
    #allocation8 [shape = 's32[2]{0}', space=sflag, size = 0x8, scoped, tag = 'scoped memory for tpu_custom_call.1']
    %7 = vsyncpa [#allocation6], 0
    %s8 = scalar_lea.sflag [#allocation6], 1
    %9 = vsyncpa %s8, 0
    %10 = vsyncpa [#allocation8], 0
    %s11 = scalar_lea.sflag [#allocation8], 1
    %12 = vsyncpa %s11, 0
    loop: start=0, step=1, limit=4
    $region2: #{tpu_custom_call.1} parent=1 // loop_pre_header
      _
    $region3: #{tpu_custom_call.1} parent=1 // loop_header
      %s14 = sphi 0, %s18
      %p15 = scmp.ge.s32.totalorder %s14, 4
      %s21 = sphi 0, %s33
      %s22 = sphi 0, %s29
      %s23 = sphi 0, %s21
      %s24 = sphi 0, %s22
      %s25 = sphi 0, %s23
      %s26 = sphi 0, %s24
      %s38 = sphi 0, %s40
      %s41 = sphi 0, %s38
      %s42 = sphi 0, %s41
      %s58 = sphi 0, %s42
      %s66 = sphi 0, %s68
      %s69 = sphi 0, %s66
      %s70 = sphi 0, %s69
      %s86 = sphi 0, %s70
      %s92 = sphi 0, %s94
      %s95 = sphi 0, %s92
      %s96 = sphi 0, %s95
      %s112 = sphi 0, %s96
    $region4: #{tpu_custom_call.1} parent=1 // loop_header_branch
      %17 = sbr.rel (%p15) target = $region8
    $region5: #{tpu_custom_call.1} parent=1 // loop_body
      %s19 = ssub.s32 %s14, 1
      %s20 = ssub.s32 %s14, 2
      %s27 = sadd.s32 1, %s22
      %p28 = scmp.ge.s32.totalorder %s27, 1
      %s29 = scalar_select %p28, 0, %s27
      %s30 = sadd.s32 1, %s21
      %s31 = scalar_select %p28, %s30, %s21
      %p32 = scmp.ge.s32.totalorder %s31, 2
      %s33 = scalar_select %p32, 0, %s31
      %s34 = ssub.s32 %s21, %s33
      %s35 = ssub.s32 %s22, %s29
      %s36 = sor.u32 %s34, %s35
      %p37 = scmp.eq.s32.totalorder %s36, 0
      %s39 = sadd.s32 %s38, 1
      %s40 = scalar_select %p37, %s38, %s39
      %p43 = pneg %p37
      %p44 = scmp.eq.s32.totalorder %s14, 1
      %p45 = por %p43, %p44
      %p46 = scmp.ne.s32.totalorder %s38, %s41
      %p47 = scmp.eq.s32.totalorder %s14, 0
      %p48 = por %p46, %p47
      %p49 = scmp.ne.s32.totalorder %s38, %s41
      %p50 = scmp.eq.s32.totalorder %s19, 1
      %p51 = por %p49, %p50
      %p52 = scmp.ne.s32.totalorder %s41, %s42
      %p53 = scmp.eq.s32.totalorder %s19, 0
      %p54 = por %p52, %p53
      %p55 = scmp.ne.s32.totalorder %s41, %s42
      %p56 = scmp.eq.s32.totalorder %s20, 1
      %p57 = por %p55, %p56
      %p59 = scmp.ne.s32.totalorder %s42, %s58
      %p60 = scmp.eq.s32.totalorder %s20, 0
      %p61 = por %p59, %p60
      %s62 = ssub.s32 %s21, %s33
      %s63 = ssub.s32 %s22, %s29
      %s64 = sor.u32 %s62, %s63
      %p65 = scmp.eq.s32.totalorder %s64, 0
      %s67 = sadd.s32 %s66, 1
      %s68 = scalar_select %p65, %s66, %s67
      %p71 = pneg %p65
      %p72 = scmp.eq.s32.totalorder %s14, 1
      %p73 = por %p71, %p72
      %p74 = scmp.ne.s32.totalorder %s66, %s69
      %p75 = scmp.eq.s32.totalorder %s14, 0
      %p76 = por %p74, %p75
      %p77 = scmp.ne.s32.totalorder %s66, %s69
      %p78 = scmp.eq.s32.totalorder %s19, 1
      %p79 = por %p77, %p78
      %p80 = scmp.ne.s32.totalorder %s69, %s70
      %p81 = scmp.eq.s32.totalorder %s19, 0
      %p82 = por %p80, %p81
      %p83 = scmp.ne.s32.totalorder %s69, %s70
      %p84 = scmp.eq.s32.totalorder %s20, 1
      %p85 = por %p83, %p84
      %p87 = scmp.ne.s32.totalorder %s70, %s86
      %p88 = scmp.eq.s32.totalorder %s20, 0
      %p89 = por %p87, %p88
      %s90 = ssub.s32 %s21, %s33
      %p91 = scmp.eq.s32.totalorder %s90, 0
      %s93 = sadd.s32 %s92, 1
      %s94 = scalar_select %p91, %s92, %s93
      %p97 = pneg %p91
      %p98 = scmp.eq.s32.totalorder %s14, 1
      %p99 = por %p97, %p98
      %p100 = scmp.ne.s32.totalorder %s92, %s95
      %p101 = scmp.eq.s32.totalorder %s14, 0
      %p102 = por %p100, %p101
      %p103 = scmp.ne.s32.totalorder %s92, %s95
      %p104 = scmp.eq.s32.totalorder %s19, 1
      %p105 = por %p103, %p104
      %p106 = scmp.ne.s32.totalorder %s95, %s96
      %p107 = scmp.eq.s32.totalorder %s19, 0
      %p108 = por %p106, %p107
      %p109 = scmp.ne.s32.totalorder %s95, %s96
      %p110 = scmp.eq.s32.totalorder %s20, 1
      %p111 = por %p109, %p110
      %p113 = scmp.ne.s32.totalorder %s96, %s112
      %p114 = scmp.eq.s32.totalorder %s20, 0
      %p115 = por %p113, %p114
      %p116 = scmp.le.s32.totalorder 1, %s14
      %p117 = scmp.lt.s32.totalorder %s14, 3
      %p118 = pnand %p116, %p117
      %p119 = pneg %p118
      // Predicated region
      $region9: #{tpu_custom_call.1} parent=5 // pred_check
        _
      $region10: #{tpu_custom_call.1} parent=5 // pred_check_branch
        %121 = sbr.rel (%p118) target = $region12
      $region11: #{tpu_custom_call.1} parent=5 // pred_region
        %s122 = ssub.s32 %s14, 1
      $region12: #{tpu_custom_call.1} parent=5 // pred_fallthru
        _
      %p123 = scmp.lt.s32.totalorder %s14, 2
      // Predicated region
      $region13: #{tpu_custom_call.1} parent=5 // pred_check
        %p124 = pneg %p123
      $region14: #{tpu_custom_call.1} parent=5 // pred_check_branch
        %126 = sbr.rel (%p124) target = $region16
      $region15: #{tpu_custom_call.1} parent=5 // pred_region
        // Predicated region
        $region17: #{tpu_custom_call.1} parent=15 // pred_check
          %p127 = pneg %p48
        $region18: #{tpu_custom_call.1} parent=15 // pred_check_branch
          %129 = sbr.rel (%p127) target = $region20
        $region19: #{tpu_custom_call.1} parent=15 // pred_region
          %s130 = sand.u32 %s38, 1
          %s131 = scalar_lea.sflag [#allocation6], %s130
          %s132 = sand.u32 %s38, 1
          %s133 = smul.addr %s132, 16
          %s134 = scalar_lea.vmem [#allocation5], %s133
          %s135 = smul.u32 4, %s22
          %137 = vsyncadd %s131, 0
          %s138 = smul.addr %s21, 4
          %s139 = sadd.s32 %s135, %s138
          %s140 = smul.addr %s139, 4
          %s141 = scalar_lea.hbm %s0, %s140
          %s143 = sshll.u32 %s141, 4
          %s144 = int_to_ptr.hbm [resolvable:$true] %s143
          %s145 = sshll.u32 %s134, 4
          %s146 = int_to_ptr.vmem [resolvable:$true] %s145
          %148 = dma.hbm_to_vmem [thread:$0]  %s144, 256, %s146, %s131
        $region20: #{tpu_custom_call.1} parent=15 // pred_fallthru
          _
        // Predicated region
        $region21: #{tpu_custom_call.1} parent=15 // pred_check
          %p149 = pneg %p76
        $region22: #{tpu_custom_call.1} parent=15 // pred_check_branch
          %151 = sbr.rel (%p149) target = $region24
        $region23: #{tpu_custom_call.1} parent=15 // pred_region
          %s152 = sand.u32 %s66, 1
          %s153 = scalar_lea.sflag [#allocation8], %s152
          %s154 = sand.u32 %s66, 1
          %s155 = smul.addr %s154, 4
          %s156 = scalar_lea.vmem [#allocation7], %s155
          %s157 = smul.u32 4, %s22
          %159 = vsyncadd %s153, 0
          %s160 = smul.addr %s21, 4
          %s161 = sadd.s32 %s157, %s160
          %s162 = scalar_lea.hbm %s1, %s161
          %s164 = sshll.u32 %s162, 4
          %s165 = int_to_ptr.hbm [resolvable:$true] %s164
          %s166 = sshll.u32 %s156, 4
          %s167 = int_to_ptr.vmem [resolvable:$true] %s166
          %169 = dma.hbm_to_vmem [thread:$0]  %s165, 64, %s167, %s153
        $region24: #{tpu_custom_call.1} parent=15 // pred_fallthru
          _
      $region16: #{tpu_custom_call.1} parent=5 // pred_fallthru
        _
      %p170 = scmp.le.s32.totalorder 1, %s14
      %p171 = scmp.lt.s32.totalorder %s14, 3
      %p172 = pnand %p170, %p171
      %p173 = pneg %p172
      // Predicated region
      $region25: #{tpu_custom_call.1} parent=5 // pred_check
        _
      $region26: #{tpu_custom_call.1} parent=5 // pred_check_branch
        %175 = sbr.rel (%p172) target = $region28
      $region27: #{tpu_custom_call.1} parent=5 // pred_region
        %s176 = ssub.s32 %s14, 1
        %s177 = sand.u32 %s41, 1
        %s178 = scalar_lea.sflag [#allocation6], %s177
        %s179 = sand.u32 %s41, 1
        %s180 = smul.addr %s179, 16
        %s181 = scalar_lea.vmem [#allocation5], %s180
        // Predicated region
        $region29: #{tpu_custom_call.1} parent=27 // pred_check
          %p182 = pneg %p54
        $region30: #{tpu_custom_call.1} parent=27 // pred_check_branch
          %184 = sbr.rel (%p182) target = $region32
        $region31: #{tpu_custom_call.1} parent=27 // pred_region
          %186 = dma.done %s178, 256
        $region32: #{tpu_custom_call.1} parent=27 // pred_fallthru
          _
        %s187 = sand.u32 %s69, 1
        %s188 = scalar_lea.sflag [#allocation8], %s187
        %s189 = sand.u32 %s69, 1
        %s190 = smul.addr %s189, 4
        %s191 = scalar_lea.vmem [#allocation7], %s190
        // Predicated region
        $region33: #{tpu_custom_call.1} parent=27 // pred_check
          %p192 = pneg %p82
        $region34: #{tpu_custom_call.1} parent=27 // pred_check_branch
          %194 = sbr.rel (%p192) target = $region36
        $region35: #{tpu_custom_call.1} parent=27 // pred_region
          %196 = dma.done %s188, 64
        $region36: #{tpu_custom_call.1} parent=27 // pred_fallthru
          _
        %s197 = sand.u32 %s41, 1
        %s198 = scalar_lea.sflag [#allocation6], %s197
        %s199 = sand.u32 %s41, 1
        %s200 = smul.addr %s199, 16
        %s201 = scalar_lea.vmem [#allocation5], %s200
        %p202 = pneg %p54
        %p203 = pneg %p51
        %s204 = sand.u32 %s69, 1
        %s205 = scalar_lea.sflag [#allocation8], %s204
        %s206 = sand.u32 %s69, 1
        %s207 = smul.addr %s206, 4
        %s208 = scalar_lea.vmem [#allocation7], %s207
        %p209 = pneg %p82
        %p210 = pneg %p79
        %p211 = pneg %p108
        %p212 = pneg %p105
        %p213 = scmp.lt.s32.totalorder %s23, 1
        %s214 = scalar_select %p213, %s23, 1
        %s215 = smul.addr %s214, 4
        %s216 = scalar_lea.vmem %s2, %s215
        %s217 = smul.u32 4, %s24
        %s218 = smul.u32 4, %s24
        %p219 = scmp.lt.s32.totalorder %s23, 1
        %s220 = scalar_select %p219, %s23, 1
        %s221 = smul.addr %s220, 4
        %s222 = scalar_lea.vmem %s2, %s221
        %p223 = scmp.eq.s32.totalorder %s24, 0
        // Predicated region
        $region37: #{tpu_custom_call.1} parent=27 // pred_check
          %p224 = pneg %p223
        $region38: #{tpu_custom_call.1} parent=27 // pred_check_branch
          %226 = sbr.rel (%p224) target = $region40
        $region39: #{tpu_custom_call.1} parent=27 // pred_region
          %vm227 = vcmask 3072
          %228 = vst.msk [vmem:[#allocation2] sm:$0xf] %vm227, 0.0
          %229 = vst.msk [vmem:[#allocation3] sm:$0xf] %vm227, 0.0
          %230 = vst.msk [vmem:[#allocation4] sm:$0xf] %vm227, 0.0
        $region40: #{tpu_custom_call.1} parent=27 // pred_fallthru
          _
        %v231 = vld [vmem:[%s181] sm:$0xff]
        %v232 = vld [vmem:[%s181 + $0x8] sm:$0xff]
        %v233 = vld [vmem:[%s191] sm:$0xf]
        %v234 = vlaneseq
        %v235 = vshrl.u32 %v234, 7
        %v236 = vperm.slane %v233, 0
        %v237 = vperm.slane %v233, 1
        %v238 = vperm.slane %v233, 2
        %v239 = vperm.slane %v233, 3
        %vm240 = vcmp.eq.s32.totalorder %v236, %v235
        %vm241 = vcmp.eq.s32.totalorder %v237, %v235
        %vm242 = vcmp.eq.s32.totalorder %v238, %v235
        %vm243 = vcmp.eq.s32.totalorder %v239, %v235
        %v244 = vld [vmem:[#allocation2] sm:$0xf]
        %247 = vst [vmem:[#allocation1] ss:$2 sm:$0xff] %v231
        %s248 = scalar_lea.vmem [#allocation1], 16
        %249 = vst [vmem:[%s248] ss:$2 sm:$0xff] %v232
        %v250 = vld.sshfl [vmem:[#allocation1] sm:$0xff pattern:$0x75316420]
        %v251 = vld.sshfl [vmem:[#allocation1 + $0x8] sm:$0xff pattern:$0x75316420]
        %v252 = vld.sshfl [vmem:[#allocation1 + $0x10] sm:$0xff pattern:$0x75316420]
        %v253 = vld.sshfl [vmem:[#allocation1 + $0x18] sm:$0xff pattern:$0x75316420]
        %v258 = vsel %vm240, %v250, 0.0
        %v259 = vsel %vm241, %v251, 0.0
        %v260 = vsel %vm242, %v252, 0.0
        %v261 = vsel %vm243, %v253, 0.0
        %vm262 = vcmask 1043456
        %v263 = vsel %vm262, %v258, 0.0
        %v264 = vsel %vm262, %v259, 0.0
        %v265 = vadd.f32 %v263, %v264
        %v266 = vsel %vm262, %v260, 0.0
        %v267 = vadd.f32 %v265, %v266
        %v268 = vsel %vm262, %v261, 0.0
        %v269 = vadd.f32 %v267, %v268
        %270 = vadd.xlane.f32.xlu0 %v269
        %v271 = vpop.xlane.xlu0 %270
        %v272 = vadd.f32 %v244, %v271
        %vm273 = vcmask 3072
        %274 = vst.msk [vmem:[#allocation2] sm:$0xf] %vm273, %v272
        %v275 = vld [vmem:[#allocation3] sm:$0xf]
        %v276 = vmul.f32 %v231, %v231
        %v277 = vmul.f32 %v232, %v232
        %280 = vst [vmem:[#allocation1] ss:$2 sm:$0xff] %v276
        %s281 = scalar_lea.vmem [#allocation1], 16
        %282 = vst [vmem:[%s281] ss:$2 sm:$0xff] %v277
        %v283 = vld.sshfl [vmem:[#allocation1] sm:$0xff pattern:$0x75316420]
        %v284 = vld.sshfl [vmem:[#allocation1 + $0x8] sm:$0xff pattern:$0x75316420]
        %v285 = vld.sshfl [vmem:[#allocation1 + $0x10] sm:$0xff pattern:$0x75316420]
        %v286 = vld.sshfl [vmem:[#allocation1 + $0x18] sm:$0xff pattern:$0x75316420]
        %v291 = vsel %vm262, %v283, 0.0
        %v292 = vsel %vm262, %v284, 0.0
        %v293 = vadd.f32 %v291, %v292
        %v294 = vsel %vm262, %v285, 0.0
        %v295 = vadd.f32 %v293, %v294
        %v296 = vsel %vm262, %v286, 0.0
        %v297 = vadd.f32 %v295, %v296
        %298 = vadd.xlane.f32.xlu0 %v297
        %v299 = vpop.xlane.xlu0 %298
        %v300 = vadd.f32 %v275, %v299
        %301 = vst.msk [vmem:[#allocation3] sm:$0xf] %vm273, %v300
        %v302 = vld [vmem:[#allocation4] sm:$0xf]
        %v303 = vsel %vm240, 1, 0
        %v304 = vsel %vm241, 1, 0
        %v305 = vsel %vm242, 1, 0
        %v306 = vsel %vm243, 1, 0
        %v307 = vcvt.s32.f32 %v303
        %v308 = vcvt.s32.f32 %v304
        %v309 = vcvt.s32.f32 %v305
        %v310 = vcvt.s32.f32 %v306
        %v311 = vsel %vm262, %v307, 0.0
        %v312 = vsel %vm262, %v308, 0.0
        %v313 = vadd.f32 %v311, %v312
        %v314 = vsel %vm262, %v309, 0.0
        %v315 = vadd.f32 %v313, %v314
        %v316 = vsel %vm262, %v310, 0.0
        %v317 = vadd.f32 %v315, %v316
        %318 = vadd.xlane.f32.xlu0 %v317
        %v319 = vpop.xlane.xlu0 %318
        %v320 = vadd.f32 %v302, %v319
        %321 = vst.msk [vmem:[#allocation4] sm:$0xf] %vm273, %v320
        // Predicated region
        $region41: #{tpu_custom_call.1} parent=27 // pred_check
          %p322 = pneg %p223
        $region42: #{tpu_custom_call.1} parent=27 // pred_check_branch
          %324 = sbr.rel (%p322) target = $region44
        $region43: #{tpu_custom_call.1} parent=27 // pred_region
          %v325 = vld [vmem:[#allocation2] sm:$0xf]
          %v326 = vadd.f32 %v325, 1e-07
          %v327 = vld [vmem:[#allocation3] sm:$0xf]
          %v328 = vld [vmem:[#allocation4] sm:$0xf]
          %v329 = vadd.f32 %v327, %v328
          %v330 = vadd.f32 %v329, 1e-07
          %v331 = vrcp.pop %v330
          %v332 = vmul.f32 %v330, %v331
          %v333 = vsub.f32 1.0, %v332
          %v334 = vmul.f32 %v331, %v333
          %v335 = vadd.f32 %v331, %v334
          %vm336 = vweird.f32 %v330
          %vm337 = vweird.f32 %v331
          %vm338 = vmor %vm336, %vm337
          %v339 = vsel %vm338, %v331, %v335
          %v340 = vand.u32 2147483647, %v330
          %vm341 = vcmp.eq.f32.partialorder %v340, 8.507059e+37
          %v342 = vand.u32 %v330, 2147483648
          %v343 = vor.u32 1.1754944e-38, %v342
          %v344 = vsel %vm341, %v343, %v339
          %v345 = vmul.f32 %v326, %v344
          %v346 = vmul.f32 %v345, 2.0
          %347 = vst.msk [vmem:[%s222] sm:$0xf] %vm273, %v346
        $region44: #{tpu_custom_call.1} parent=27 // pred_fallthru
          _
        %p348 = scmp.lt.s32.totalorder %s23, 1
        %s349 = scalar_select %p348, %s23, 1
        %s350 = smul.addr %s349, 4
        %s351 = scalar_lea.vmem %s2, %s350
        // Predicated region
        $region45: #{tpu_custom_call.1} parent=27 // pred_check
          %p352 = pneg %p105
        $region46: #{tpu_custom_call.1} parent=27 // pred_check_branch
          %354 = sbr.rel (%p352) target = $region48
        $region47: #{tpu_custom_call.1} parent=27 // pred_region
          _
        $region48: #{tpu_custom_call.1} parent=27 // pred_fallthru
          _
      $region28: #{tpu_custom_call.1} parent=5 // pred_fallthru
        _
      %p355 = scmp.le.s32.totalorder 2, %s14
      // Predicated region
      $region49: #{tpu_custom_call.1} parent=5 // pred_check
        %p356 = pneg %p355
      $region50: #{tpu_custom_call.1} parent=5 // pred_check_branch
        %358 = sbr.rel (%p356) target = $region52
      $region51: #{tpu_custom_call.1} parent=5 // pred_region
        %s359 = ssub.s32 %s14, 2
        // Predicated region
        $region53: #{tpu_custom_call.1} parent=51 // pred_check
          %p360 = pneg %p111
        $region54: #{tpu_custom_call.1} parent=51 // pred_check_branch
          %362 = sbr.rel (%p360) target = $region56
        $region55: #{tpu_custom_call.1} parent=51 // pred_region
          %p363 = scmp.lt.s32.totalorder %s25, 1
          %s364 = scalar_select %p363, %s25, 1
          %s365 = smul.addr %s364, 4
          %s366 = scalar_lea.vmem %s2, %s365
        $region56: #{tpu_custom_call.1} parent=51 // pred_fallthru
          _
      $region52: #{tpu_custom_call.1} parent=5 // pred_fallthru
        _
    $region6: #{tpu_custom_call.1} parent=1 // loop_footer
      %s18 = sadd.s32 1, %s14
    $region7: #{tpu_custom_call.1} parent=1 // loop_footer_branch
      %13 = sbr.rel target = $region3
    $region8: #{tpu_custom_call.1} parent=1 // loop_exit
      _
    %367 = vsyncpa [#allocation6], 1
    %s368 = scalar_lea.sflag [#allocation6], 1
    %369 = vsyncpa %s368, 1
    %370 = vsyncpa [#allocation8], 1
    %s371 = scalar_lea.sflag [#allocation8], 1
    %372 = vsyncpa %s371, 1

</llo_original>
